<compile_context>
chip_gen: v5e
topology: v5e:2x2
jax: 0.10.0
libtpu: 0.0.40
codegen_flags: <defaults>
</compile_context>

<pallas_src>
import jax
import jax.numpy as jnp
from jax import lax
from jax.experimental import pallas as pl
from jax.experimental.pallas import tpu as pltpu


# ---------------------------- Pallas kernel ----------------------------

def _l2norm_kernel(x_ref, w_ref, o_ref):
    """One (C, hw_tile) tile: L2-normalize each lane column over channels.

    x_ref: (C, hw_t)  activation tile (channels on sublanes, pixels on lanes)
    w_ref: (C, 1)     per-channel scale (broadcast over lanes)
    o_ref: (C, hw_t)  output tile
    """
    x = x_ref[...].astype(jnp.float32)
    ss = jnp.sum(x * x, axis=0, keepdims=True)         # (1, hw_t) f32, XLU sublane reduce
    # PyTorch: x / (sqrt(ss) + 1e-10).  rsqrt(ss + 1e-20) matches to ~1e-10
    # relative error and is a single EUP op (no divide chain).
    inv = lax.rsqrt(ss + 1e-20)                         # EUP rsqrt
    w = w_ref[...].astype(jnp.float32)                  # (C, 1)
    o_ref[...] = ((x * inv) * w).astype(o_ref.dtype)    # VALU multiplies


# ---------------------------- wrapper ----------------------------

def l2norm(x_nchw, weight, *, hw_tile_hint=None):
    """L2Norm forward.  x_nchw: [N, C, H, W].  weight: [1, C, 1, 1]."""
    N, C, H, W = x_nchw.shape
    HW = H * W
    dtype = x_nchw.dtype

    # Free reshapes only (contiguous dim merge / split): no HBM traffic.
    x3d = x_nchw.reshape(N, C, HW)
    w2d = weight.reshape(C, 1)

    # Lane-tile size from a VMEM byte budget: ~3 MiB per block buffer ->
    # ~12 MiB total double-buffered (in + out), well inside the 32 MiB scoped
    # limit requested below on every generation (v5e/v6e/v7x).
    itemsize = jnp.dtype(dtype).itemsize
    budget_bytes = 3 * 1024 * 1024
    hw_t = budget_bytes // (C * itemsize)
    if hw_tile_hint is not None:
        hw_t = min(hw_t, hw_tile_hint)
    if hw_t >= HW:
        hw_t = HW                                   # full lane extent: always legal
    else:
        hw_t = max(128, (hw_t // 128) * 128)        # tiled lanes must be %128

    grid = (N, pl.cdiv(HW, hw_t))

    out = pl.pallas_call(
        _l2norm_kernel,
        out_shape=jax.ShapeDtypeStruct((N, C, HW), dtype),
        grid_spec=pltpu.PrefetchScalarGridSpec(
            num_scalar_prefetch=0,
            grid=grid,
            in_specs=[
                # Activations: batch squeezed, (C, hw_t) tiles over the pixels.
                pl.BlockSpec((None, C, hw_t), lambda n, j: (n, 0, j)),
                # Per-channel scale: tiny tile, resident across the whole grid.
                pl.BlockSpec((C, 1), lambda n, j: (0, 0)),
            ],
            out_specs=pl.BlockSpec((None, C, hw_t), lambda n, j: (n, 0, j)),
        ),
        compiler_params=pltpu.CompilerParams(
            dimension_semantics=("parallel", "parallel"),
            vmem_limit_bytes=32 * 1024 * 1024,
        ),
    )(x3d, w2d)

    return out.reshape(N, C, H, W)


# ---------------------------- test ----------------------------

def _reference(x, weight):
    x = x.astype(jnp.float32)
    w = weight.astype(jnp.float32)
    norm = jnp.sqrt(jnp.sum(x * x, axis=1, keepdims=True))
    return w * x / (norm + 1e-10)


if __name__ == "__main__":
    key = jax.random.PRNGKey(0)
    fwd = jax.jit(l2norm, static_argnames=("hw_tile_hint",))

    k1, k2, k3, k4 = jax.random.split(key, 4)

    # Case 1: small shapes matching the module (batch=2, C=4, 16x16 spatial).
    x1 = jax.random.normal(k1, (2, 4, 16, 16), jnp.float32)
    w1 = jnp.ones((1, 4, 1, 1), jnp.float32)   # nn.Parameter(torch.ones(1, C, 1, 1))
    out1 = jax.block_until_ready(fwd(x1, w1))
    assert out1.shape == x1.shape
    assert bool(jnp.all(jnp.isfinite(out1)))
    assert float(jnp.max(jnp.abs(out1 - _reference(x1, w1)))) < 1e-4

    # Case 2: S3FD-like channels, multiple lane tiles + a ragged last tile
    # (HW = 320, tile = 128 -> grid of 3, last block partial; OOB writes drop).
    x2 = jax.random.normal(k2, (2, 256, 16, 20), jnp.float32)
    w2 = 1.0 + 0.1 * jax.random.normal(k3, (1, 256, 1, 1), jnp.float32)
    out2 = jax.block_until_ready(fwd(x2, w2, hw_tile_hint=128))
    assert out2.shape == x2.shape
    assert bool(jnp.all(jnp.isfinite(out2)))
    assert float(jnp.max(jnp.abs(out2 - _reference(x2, w2)))) < 1e-4

    # Case 3: bf16 activations -- I/O stays bf16 (halves HBM bytes), math in f32.
    x3 = jax.random.normal(k4, (2, 64, 16, 16), jnp.float32).astype(jnp.bfloat16)
    w3 = jnp.ones((1, 64, 1, 1), jnp.float32)
    out3 = jax.block_until_ready(fwd(x3, w3))
    assert out3.shape == x3.shape and out3.dtype == jnp.bfloat16
    assert float(jnp.max(jnp.abs(out3.astype(jnp.float32)
                                 - _reference(x3, w3)))) < 2e-2

    print("KERNEL_OK")
</pallas_src>

<mosaic_0001>
module attributes {stable_mosaic.version = 11 : i64} {
  func.func @_l2norm_kernel(%arg0: i32, %arg1: i32, %arg2: memref<1x4x256xf32, #tpu.memory_space<vmem>>, %arg3: memref<4x1xf32, #tpu.memory_space<vmem>>, %arg4: memref<1x4x256xf32, #tpu.memory_space<vmem>>) attributes {dimension_semantics = [#tpu.dimension_semantics<parallel>, #tpu.dimension_semantics<parallel>], iteration_bounds = array<i64: 2, 1>, scalar_prefetch = 0 : i64, scratch_operands = 0 : i64, tpu.core_type = #tpu.core_type<tc>, window_params = [{transform_indices = @transform_0, window_bounds = array<i64: 1, 4, 256>}, {pipeline_mode = #tpu.pipeline_mode<synchronous>, transform_indices = @transform_1, window_bounds = array<i64: 4, 1>}, {transform_indices = @transform_2, window_bounds = array<i64: 1, 4, 256>}]} {
    %c0 = arith.constant 0 : index
    %c0_0 = arith.constant 0 : index
    %c0_1 = arith.constant 0 : index
    %0 = vector.load %arg2[%c0, %c0_0, %c0_1] : memref<1x4x256xf32, #tpu.memory_space<vmem>>, vector<1x4x256xf32>
    %1 = vector.shape_cast %0 : vector<1x4x256xf32> to vector<4x256xf32>
    %2 = arith.mulf %1, %1 : vector<4x256xf32>
    %cst = arith.constant dense<0.000000e+00> : vector<256xf32>
    %3 = vector.multi_reduction <add>, %2, %cst [0] : vector<4x256xf32> to vector<256xf32>
    %4 = vector.shape_cast %3 : vector<256xf32> to vector<1x256xf32>
    %cst_2 = arith.constant 9.99999968E-21 : f32
    %5 = vector.broadcast %cst_2 : f32 to vector<1x256xf32>
    %6 = arith.addf %4, %5 : vector<1x256xf32>
    %7 = math.rsqrt %6 : vector<1x256xf32>
    %c0_3 = arith.constant 0 : index
    %c0_4 = arith.constant 0 : index
    %8 = vector.load %arg3[%c0_3, %c0_4] : memref<4x1xf32, #tpu.memory_space<vmem>>, vector<4x1xf32>
    %9 = vector.broadcast %7 : vector<1x256xf32> to vector<4x256xf32>
    %10 = arith.mulf %1, %9 : vector<4x256xf32>
    %11 = vector.broadcast %8 : vector<4x1xf32> to vector<4x256xf32>
    %12 = arith.mulf %10, %11 : vector<4x256xf32>
    %c0_5 = arith.constant 0 : index
    %c0_6 = arith.constant 0 : index
    %c0_7 = arith.constant 0 : index
    %13 = vector.load %arg4[%c0_5, %c0_6, %c0_7] : memref<1x4x256xf32, #tpu.memory_space<vmem>>, vector<1x4x256xf32>
    %14 = vector.shape_cast %13 : vector<1x4x256xf32> to vector<4x256xf32>
    %15 = vector.shape_cast %12 : vector<4x256xf32> to vector<1x4x256xf32>
    tpu.vector_store %arg4[%c0_5, %c0_6, %c0_7], %15 {strides = array<i32>} : memref<1x4x256xf32, #tpu.memory_space<vmem>>, vector<1x4x256xf32>,
    return
  }
  func.func @transform_0(%arg0: i32, %arg1: i32) -> (i32, i32, i32) {
    %c0_i32 = arith.constant 0 : i32
    %c0_i32_0 = arith.constant 0 : i32
    return %arg0, %c0_i32, %arg1 : i32, i32, i32
  }
  func.func @transform_1(%arg0: i32, %arg1: i32) -> (i32, i32) {
    %c0_i32 = arith.constant 0 : i32
    %c0_i32_0 = arith.constant 0 : i32
    %c0_i32_1 = arith.constant 0 : i32
    return %c0_i32, %c0_i32_0 : i32, i32
  }
  func.func @transform_2(%arg0: i32, %arg1: i32) -> (i32, i32, i32) {
    %c0_i32 = arith.constant 0 : i32
    %c0_i32_0 = arith.constant 0 : i32
    return %arg0, %c0_i32, %arg1 : i32, i32, i32
  }
}

</mosaic_0001>

<llo_original>
// kernel: l2norm.1
$region0: #{l2norm.1}
  #allocation0 [shape = 'u32[]', space=smem, size = 0x4, offset = 0x4, fixed_abs, tag = 'smem constant byte address 0x4 - core index']
  #allocation1 [shape = 'u32[72,128]{1,0:T(1,128)}', space=vmem, size = 0x9000, scoped, tag = 'internal scratch']
  %s0 = inlined_call_operand.vmem [shape: f32[2,4,256], index: 0, kind: input, shape index: {}]
  %s1 = inlined_call_operand.vmem [shape: f32[4,1], index: 1, kind: input, shape index: {}]
  %s2 = inlined_call_operand.vmem [shape: f32[2,4,256], index: 2, kind: output, shape index: {}]
  %s3 = sld [smem:[#allocation0]]
  $region41: #{l2norm.1} parent=0
    _
  %s5 = ssub.s32 1, %s3
  %s6 = scalar_select 0, %s5, %s3
  loop: start=0, step=1, limit=4
  $region2: #{l2norm.1} parent=0 // loop_pre_header
    _
  $region3: #{l2norm.1} parent=0 // loop_header
    %s8 = sphi 0, %s12
    %p9 = scmp.ge.s32.totalorder %s8, 4
    %s15 = sphi 0, %s27
    %s16 = sphi 0, %s23
    %s17 = sphi 0, %s15
    %s18 = sphi 0, %s16
    %s19 = sphi 0, %s17
    %s20 = sphi 0, %s18
    %s32 = sphi 0, %s34
    %s35 = sphi 0, %s32
    %s36 = sphi 0, %s35
    %s52 = sphi 0, %s36
    %s56 = sphi 0, %s56
    %s58 = sphi 0, %s56
    %s59 = sphi 0, %s58
    %s73 = sphi 0, %s59
    %s81 = sphi 0, %s83
    %s84 = sphi 0, %s81
    %s85 = sphi 0, %s84
    %s101 = sphi 0, %s85
  $region4: #{l2norm.1} parent=0 // loop_header_branch
    %11 = sbr.rel (%p9) target = $region8
  $region5: #{l2norm.1} parent=0 // loop_body
    %s13 = ssub.s32 %s8, 1
    %s14 = ssub.s32 %s8, 2
    %s21 = sadd.s32 1, %s16
    %p22 = scmp.ge.s32.totalorder %s21, 1
    %s23 = scalar_select %p22, 0, %s21
    %s24 = sadd.s32 1, %s15
    %s25 = scalar_select %p22, %s24, %s15
    %p26 = scmp.ge.s32.totalorder %s25, 2
    %s27 = scalar_select %p26, 0, %s25
    %s28 = ssub.s32 %s15, %s27
    %s29 = ssub.s32 %s16, %s23
    %s30 = sor.u32 %s28, %s29
    %p31 = scmp.eq.s32.totalorder %s30, 0
    %s33 = sadd.s32 %s32, 1
    %s34 = scalar_select %p31, %s32, %s33
    %p37 = pneg %p31
    %p38 = scmp.eq.s32.totalorder %s8, 1
    %p39 = por %p37, %p38
    %p40 = scmp.ne.s32.totalorder %s32, %s35
    %p41 = scmp.eq.s32.totalorder %s8, 0
    %p42 = por %p40, %p41
    %p43 = scmp.ne.s32.totalorder %s32, %s35
    %p44 = scmp.eq.s32.totalorder %s13, 1
    %p45 = por %p43, %p44
    %p46 = scmp.ne.s32.totalorder %s35, %s36
    %p47 = scmp.eq.s32.totalorder %s13, 0
    %p48 = por %p46, %p47
    %p49 = scmp.ne.s32.totalorder %s35, %s36
    %p50 = scmp.eq.s32.totalorder %s14, 1
    %p51 = por %p49, %p50
    %p53 = scmp.ne.s32.totalorder %s36, %s52
    %p54 = scmp.eq.s32.totalorder %s14, 0
    %p55 = por %p53, %p54
    %s57 = sadd.s32 %s56, 1
    %p60 = scmp.eq.s32.totalorder %s8, 1
    %p61 = scmp.ne.s32.totalorder %s56, %s58
    %p62 = scmp.eq.s32.totalorder %s8, 0
    %p63 = por %p61, %p62
    %p64 = scmp.ne.s32.totalorder %s56, %s58
    %p65 = scmp.eq.s32.totalorder %s13, 1
    %p66 = por %p64, %p65
    %p67 = scmp.ne.s32.totalorder %s58, %s59
    %p68 = scmp.eq.s32.totalorder %s13, 0
    %p69 = por %p67, %p68
    %p70 = scmp.ne.s32.totalorder %s58, %s59
    %p71 = scmp.eq.s32.totalorder %s14, 1
    %p72 = por %p70, %p71
    %p74 = scmp.ne.s32.totalorder %s59, %s73
    %p75 = scmp.eq.s32.totalorder %s14, 0
    %p76 = por %p74, %p75
    %s77 = ssub.s32 %s15, %s27
    %s78 = ssub.s32 %s16, %s23
    %s79 = sor.u32 %s77, %s78
    %p80 = scmp.eq.s32.totalorder %s79, 0
    %s82 = sadd.s32 %s81, 1
    %s83 = scalar_select %p80, %s81, %s82
    %p86 = pneg %p80
    %p87 = scmp.eq.s32.totalorder %s8, 1
    %p88 = por %p86, %p87
    %p89 = scmp.ne.s32.totalorder %s81, %s84
    %p90 = scmp.eq.s32.totalorder %s8, 0
    %p91 = por %p89, %p90
    %p92 = scmp.ne.s32.totalorder %s81, %s84
    %p93 = scmp.eq.s32.totalorder %s13, 1
    %p94 = por %p92, %p93
    %p95 = scmp.ne.s32.totalorder %s84, %s85
    %p96 = scmp.eq.s32.totalorder %s13, 0
    %p97 = por %p95, %p96
    %p98 = scmp.ne.s32.totalorder %s84, %s85
    %p99 = scmp.eq.s32.totalorder %s14, 1
    %p100 = por %p98, %p99
    %p102 = scmp.ne.s32.totalorder %s85, %s101
    %p103 = scmp.eq.s32.totalorder %s14, 0
    %p104 = por %p102, %p103
    %p105 = scmp.le.s32.totalorder 1, %s8
    %p106 = scmp.lt.s32.totalorder %s8, 3
    %p107 = pnand %p105, %p106
    %p108 = pneg %p107
    // Predicated region
    $region9: #{l2norm.1} parent=5 // pred_check
      _
    $region10: #{l2norm.1} parent=5 // pred_check_branch
      %110 = sbr.rel (%p107) target = $region12
    $region11: #{l2norm.1} parent=5 // pred_region
      %s111 = ssub.s32 %s8, 1
      // Predicated region
      $region13: #{l2norm.1} parent=11 // pred_check
        %p112 = pneg %p69
      $region14: #{l2norm.1} parent=11 // pred_check_branch
        %114 = sbr.rel (%p112) target = $region16
      $region15: #{l2norm.1} parent=11 // pred_region
        _
      $region16: #{l2norm.1} parent=11 // pred_fallthru
        _
    $region12: #{l2norm.1} parent=5 // pred_fallthru
      _
    %p115 = scmp.lt.s32.totalorder %s8, 2
    // Predicated region
    $region17: #{l2norm.1} parent=5 // pred_check
      %p116 = pneg %p115
    $region18: #{l2norm.1} parent=5 // pred_check_branch
      %118 = sbr.rel (%p116) target = $region20
    $region19: #{l2norm.1} parent=5 // pred_region
      // Predicated region
      $region21: #{l2norm.1} parent=19 // pred_check
        %p119 = pneg %p42
      $region22: #{l2norm.1} parent=19 // pred_check_branch
        %121 = sbr.rel (%p119) target = $region24
      $region23: #{l2norm.1} parent=19 // pred_region
        %s122 = smul.u32 2, %s16
        %p123 = scmp.lt.s32.totalorder %s15, 1
        %s124 = scalar_select %p123, %s15, 1
        %p125 = scmp.lt.s32.totalorder %s122, 1
        %s126 = scalar_select %p125, %s122, 1
        %s127 = smul.addr %s124, 2
        %s128 = sadd.s32 %s126, %s127
        %s129 = smul.addr %s128, 4
        %s130 = scalar_lea.vmem %s0, %s129
        %s131 = smul.u32 2, %s16
      $region24: #{l2norm.1} parent=19 // pred_fallthru
        _
    $region20: #{l2norm.1} parent=5 // pred_fallthru
      _
    %p132 = scmp.le.s32.totalorder 1, %s8
    %p133 = scmp.lt.s32.totalorder %s8, 3
    %p134 = pnand %p132, %p133
    %p135 = pneg %p134
    // Predicated region
    $region25: #{l2norm.1} parent=5 // pred_check
      _
    $region26: #{l2norm.1} parent=5 // pred_check_branch
      %137 = sbr.rel (%p134) target = $region28
    $region27: #{l2norm.1} parent=5 // pred_region
      %s138 = ssub.s32 %s8, 1
      %s139 = smul.u32 2, %s18
      %p140 = scmp.lt.s32.totalorder %s17, 1
      %s141 = scalar_select %p140, %s17, 1
      %p142 = scmp.lt.s32.totalorder %s139, 1
      %s143 = scalar_select %p142, %s139, 1
      %s144 = smul.addr %s141, 2
      %s145 = sadd.s32 %s143, %s144
      %s146 = smul.addr %s145, 4
      %s147 = scalar_lea.vmem %s0, %s146
      %p148 = pneg %p48
      %p149 = pneg %p45
      %p150 = pneg %p69
      %p151 = pneg %p66
      %p152 = pneg %p97
      %p153 = pneg %p94
      %s154 = smul.u32 2, %s18
      %p155 = scmp.lt.s32.totalorder %s17, 1
      %s156 = scalar_select %p155, %s17, 1
      %p157 = scmp.lt.s32.totalorder %s154, 1
      %s158 = scalar_select %p157, %s154, 1
      %s159 = smul.addr %s156, 2
      %s160 = sadd.s32 %s158, %s159
      %s161 = smul.addr %s160, 4
      %s162 = scalar_lea.vmem %s2, %s161
      %s163 = smul.u32 2, %s18
      %p164 = scmp.lt.s32.totalorder %s17, 1
      %s165 = scalar_select %p164, %s17, 1
      %p166 = scmp.lt.s32.totalorder %s163, 1
      %s167 = scalar_select %p166, %s163, 1
      %s168 = smul.addr %s165, 2
      %s169 = sadd.s32 %s167, %s168
      %s170 = smul.addr %s169, 4
      %s171 = scalar_lea.vmem %s0, %s170
      %s172 = smul.u32 2, %s18
      %s173 = smul.u32 2, %s18
      %p174 = scmp.lt.s32.totalorder %s17, 1
      %s175 = scalar_select %p174, %s17, 1
      %p176 = scmp.lt.s32.totalorder %s173, 1
      %s177 = scalar_select %p176, %s173, 1
      %s178 = smul.addr %s175, 2
      %s179 = sadd.s32 %s177, %s178
      %s180 = smul.addr %s179, 4
      %s181 = scalar_lea.vmem %s2, %s180
      %s182 = smul.u32 2, %s18
      %v183 = vld [vmem:[%s171] sm:$0xff]
      %v184 = vmul.f32 %v183, %v183
      %186 = vst [vmem:[#allocation1] ss:$2 sm:$0xff] %v184
      %v187 = vld.sshfl [vmem:[#allocation1] sm:$0xff pattern:$0x75316420]
      %v188 = vld.sshfl [vmem:[#allocation1 + $0x8] sm:$0xff pattern:$0x75316420]
      %vm191 = vcmask 1043456
      %v192 = vsel %vm191, %v187, 0.0
      %v193 = vrot.slane %v192, 4
      %v194 = vadd.f32 %v192, %v193
      %v195 = vrot.slane %v194, 2
      %v196 = vadd.f32 %v194, %v195
      %v197 = vrot.slane %v196, 1
      %v198 = vadd.f32 %v196, %v197
      %v199 = vsel %vm191, %v188, 0.0
      %v200 = vrot.slane %v199, 4
      %v201 = vadd.f32 %v199, %v200
      %v202 = vrot.slane %v201, 2
      %v203 = vadd.f32 %v201, %v202
      %v204 = vrot.slane %v203, 1
      %v205 = vadd.f32 %v203, %v204
      %v206 = vadd.f32 %v198, 1e-20
      %v207 = vadd.f32 %v205, 1e-20
      %v208 = vrsqrt.pop %v206
      %v209 = vmul.f32 %v208, %v206
      %v210 = vmul.f32 %v209, %v208
      %v211 = vmul.f32 0.5, %v210
      %v212 = vsub.f32 1.5, %v211
      %v213 = vmul.f32 %v208, %v212
      %vm214 = vweird.f32 %v206
      %vm215 = vweird.f32 %v208
      %vm216 = vmor %vm214, %vm215
      %v217 = vsel %vm216, %v208, %v213
      %v218 = vrsqrt.pop %v207
      %v219 = vmul.f32 %v218, %v207
      %v220 = vmul.f32 %v219, %v218
      %v221 = vmul.f32 0.5, %v220
      %v222 = vsub.f32 1.5, %v221
      %v223 = vmul.f32 %v218, %v222
      %vm224 = vweird.f32 %v207
      %vm225 = vweird.f32 %v218
      %vm226 = vmor %vm224, %vm225
      %v227 = vsel %vm226, %v218, %v223
      %v228 = vld [vmem:[%s1] sm:$0xf]
      %v231 = vrot.slane %v227, 4
      %v232 = vsel %vm191, %v217, %v231
      %v234 = vmul.f32 %v183, %v232
      %236 = vset.pattern.permute.xlu0 0
      %237 = vperm.xlu0 %236, %v228
      %v238 = vpop.permute.xlu0 %237
      %v240 = vunpack.c.l.s4 839922192
      %v241 = vunpack.c.0.s8 %v240
      %v242 = vperm.slane %v238, %v241
      %v244 = vmul.f32 %v234, %v242
      %245 = vst [vmem:[%s181] sm:$0xff] %v244
      %s246 = smul.u32 2, %s18
      %p247 = scmp.lt.s32.totalorder %s17, 1
      %s248 = scalar_select %p247, %s17, 1
      %p249 = scmp.lt.s32.totalorder %s246, 1
      %s250 = scalar_select %p249, %s246, 1
      %s251 = smul.addr %s248, 2
      %s252 = sadd.s32 %s250, %s251
      %s253 = smul.addr %s252, 4
      %s254 = scalar_lea.vmem %s2, %s253
      // Predicated region
      $region29: #{l2norm.1} parent=27 // pred_check
        %p255 = pneg %p94
      $region30: #{l2norm.1} parent=27 // pred_check_branch
        %257 = sbr.rel (%p255) target = $region32
      $region31: #{l2norm.1} parent=27 // pred_region
        %s258 = smul.u32 2, %s18
      $region32: #{l2norm.1} parent=27 // pred_fallthru
        _
    $region28: #{l2norm.1} parent=5 // pred_fallthru
      _
    %p259 = scmp.le.s32.totalorder 2, %s8
    // Predicated region
    $region33: #{l2norm.1} parent=5 // pred_check
      %p260 = pneg %p259
    $region34: #{l2norm.1} parent=5 // pred_check_branch
      %262 = sbr.rel (%p260) target = $region36
    $region35: #{l2norm.1} parent=5 // pred_region
      %s263 = ssub.s32 %s8, 2
      // Predicated region
      $region37: #{l2norm.1} parent=35 // pred_check
        %p264 = pneg %p100
      $region38: #{l2norm.1} parent=35 // pred_check_branch
        %266 = sbr.rel (%p264) target = $region40
      $region39: #{l2norm.1} parent=35 // pred_region
        %s267 = smul.u32 2, %s20
        %p268 = scmp.lt.s32.totalorder %s19, 1
        %s269 = scalar_select %p268, %s19, 1
        %p270 = scmp.lt.s32.totalorder %s267, 1
        %s271 = scalar_select %p270, %s267, 1
        %s272 = smul.addr %s269, 2
        %s273 = sadd.s32 %s271, %s272
        %s274 = smul.addr %s273, 4
        %s275 = scalar_lea.vmem %s2, %s274
      $region40: #{l2norm.1} parent=35 // pred_fallthru
        _
    $region36: #{l2norm.1} parent=5 // pred_fallthru
      _
  $region6: #{l2norm.1} parent=0 // loop_footer
    %s12 = sadd.s32 1, %s8
  $region7: #{l2norm.1} parent=0 // loop_footer_branch
    %7 = sbr.rel target = $region3
  $region8: #{l2norm.1} parent=0 // loop_exit
    _

</llo_original>
